<compile_context>
chip_gen: v5e
topology: v5e:2x2
jax: 0.10.0
libtpu: 0.0.40
codegen_flags: <defaults>
</compile_context>

<pallas_src>
import jax
import jax.numpy as jnp
from jax.experimental import pallas as pl
from jax.experimental.pallas import tpu as pltpu


def _round_up(x, m):
    return ((x + m - 1) // m) * m


def ffnn_kernel(x_ref, w_ref, b_ref, out_ref):
    """One batch tile: out_row = sigmoid(w_fused . x_tile^T + b_fused).

    x_ref:   (tb, d_in) bf16, streamed per grid step.
    w_ref:   (8, d_in)  bf16, resident; row 0 holds the fused weights, rest zero.
    b_ref:   (1,)       f32 scalar in SMEM (fused bias).
    out_ref: (1, tb)    f32, lane-dense (batch on the lane axis).
    """
    # Contract the last dim of both operands (QK^T-style): the batch axis lands
    # on the lanes of the result, so the store below is an unmasked full-lane
    # vst and no in-kernel transpose is needed.
    acc = jax.lax.dot_general(
        w_ref[...], x_ref[...],
        dimension_numbers=(((1,), (1,)), ((), ())),
        preferred_element_type=jnp.float32,
    )  # (8, tb) f32; only row 0 is meaningful (rows 1..7 of w are zero)
    out_ref[...] = jax.nn.sigmoid(acc[0:1, :] + b_ref[0]).astype(out_ref.dtype)


def _vmem_config():
    # Chip-aware budgets: ~half of physical VMEM for the tile budget, ~3/4 for
    # the Mosaic scoped limit.  Falls back to v7x-sized (64 MiB) numbers.
    try:
        cap = int(pltpu.get_tpu_info().vmem_capacity_bytes)
    except Exception:
        cap = 64 * 1024 * 1024
    tile_budget = min(cap // 2, 64 * 1024 * 1024)
    vmem_limit = min((cap * 3) // 4, 96 * 1024 * 1024)
    return tile_budget, int(vmem_limit)


def _choose_batch_tile(b_rows, d_in, vmem_budget_bytes):
    # Per-step VMEM: x tile double-buffered (bf16) + out row double-buffered
    # (f32) + the tiny resident fused-weight block (counted double-buffered).
    tb = 4096
    per_row = 2 * d_in * 2 + 2 * 4
    fixed = 2 * 8 * d_in * 2
    while tb > 128 and fixed + tb * per_row > vmem_budget_bytes:
        tb //= 2
    tb = min(tb, b_rows)
    # v7x megacore: give the "parallel" batch axis >= 2 grid steps when there is
    # enough work for both TensorCores (no-op on single-TC v5e/v6e).
    if b_rows >= 256 and pl.cdiv(b_rows, tb) < 2:
        tb = max(128, _round_up(pl.cdiv(b_rows, 2), 128))
    return tb


def ffnn_forward(src, embed_table, w1, b1, w2, b2, window_size, d_model,
                 tile_batch=None):
    B = src.shape[0]
    d_in = window_size * d_model

    # No activation between the two Linear layers in the module, so they fold
    # into a single affine map (exact up to float reassociation):
    #   sigmoid((x @ w1 + b1) @ w2 + b2) == sigmoid(x @ (w1 @ w2) + (b1 @ w2 + b2))
    w_fused = (w1 @ w2).reshape(1, d_in)                        # (1, d_in) f32
    b_fused = (b1 @ w2 + b2).reshape(1).astype(jnp.float32)     # (1,)
    # Pad the fused weight row to 8 sublanes (row 0 real, rows 1..7 zero).
    w_p = jnp.pad(w_fused, ((0, 7), (0, 0))).astype(jnp.bfloat16)

    # Embedding lookup + dropout (identity in eval) + flatten.  Gather straight
    # into the kernel's compute dtype so x crosses HBM exactly once each way.
    x = jnp.take(embed_table.astype(jnp.bfloat16), src, axis=0).reshape(B, d_in)

    # Row-align the batch to 16 (bf16 sublane packing); ragged final tiles are
    # handled by Pallas boundary masking, so no padding up to the tile size.
    b_rows = _round_up(B, 16)
    if b_rows != B:
        x = jnp.pad(x, ((0, b_rows - B), (0, 0)))

    tile_budget, vmem_limit = _vmem_config()
    if tile_batch is None:
        tb = _choose_batch_tile(b_rows, d_in, tile_budget)
    else:
        tb = min(int(tile_batch), b_rows)
        if tb < b_rows:  # multi-step grids need lane-aligned (x128) tiles
            tb = max(128, (tb // 128) * 128)

    num_tiles = pl.cdiv(b_rows, tb)
    out_cols = num_tiles * tb

    cost = pl.CostEstimate(
        flops=2 * 8 * d_in * out_cols,
        transcendentals=out_cols,
        bytes_accessed=b_rows * d_in * 2 + 8 * d_in * 2 + out_cols * 4,
    )

    out = pl.pallas_call(
        ffnn_kernel,
        out_shape=jax.ShapeDtypeStruct((1, out_cols), jnp.float32),
        grid=(num_tiles,),
        in_specs=[
            pl.BlockSpec((tb, d_in), lambda i: (i, 0)),          # x: streamed
            pl.BlockSpec((8, d_in), lambda i: (0, 0)),           # fused w: resident
            pl.BlockSpec(memory_space=pltpu.MemorySpace.SMEM),   # fused bias scalar
        ],
        out_specs=pl.BlockSpec((1, tb), lambda i: (0, i)),       # lane-dense row
        compiler_params=pltpu.CompilerParams(
            dimension_semantics=("parallel",),
            vmem_limit_bytes=vmem_limit,
        ),
        cost_estimate=cost,
    )(x, w_p, b_fused)

    return out.reshape(-1)[:B].reshape(B, 1)


if __name__ == "__main__":
    # Small shapes consistent with the module.
    vocab_size = 32
    window_size = 8
    d_model = 32
    d_hidden = 32

    key = jax.random.PRNGKey(0)
    k_emb, k_w1, k_b1, k_w2, k_b2, k_s1, k_s2 = jax.random.split(key, 7)

    # Deterministic synthetic parameters. Linear weights are stored transposed
    # relative to nn.Linear.weight: (in_features, out_features).
    embed_table = jax.random.normal(k_emb, (vocab_size, d_model), jnp.float32) * 0.02
    w1 = jax.random.normal(k_w1, (window_size * d_model, d_hidden), jnp.float32) * 0.05
    b1 = jax.random.normal(k_b1, (d_hidden,), jnp.float32) * 0.05
    w2 = jax.random.normal(k_w2, (d_hidden, 1), jnp.float32) * 0.05
    b2 = jax.random.normal(k_b2, (1,), jnp.float32) * 0.05

    def reference(src):
        xr = jnp.take(embed_table, src, axis=0).reshape(src.shape[0], -1)
        return jax.nn.sigmoid((xr @ w1 + b1) @ w2 + b2)

    # Case 1: tiny batch (single grid step, batch row-padding path).
    src_a = jax.random.randint(k_s1, (2, window_size), 0, vocab_size, jnp.int32)
    out_a = jax.block_until_ready(
        ffnn_forward(src_a, embed_table, w1, b1, w2, b2, window_size, d_model))
    assert out_a.shape == (2, 1)
    assert jnp.allclose(out_a, reference(src_a), atol=5e-3, rtol=5e-3)

    # Case 2: multi-step grid with a partial final batch tile (lane-dense
    # output blocks, >=2 parallel steps for megacore).
    src_b = jax.random.randint(k_s2, (300, window_size), 0, vocab_size, jnp.int32)
    out_b = jax.block_until_ready(
        ffnn_forward(src_b, embed_table, w1, b1, w2, b2, window_size, d_model,
                     tile_batch=128))
    assert out_b.shape == (300, 1)
    assert jnp.allclose(out_b, reference(src_b), atol=5e-3, rtol=5e-3)

    print("KERNEL_OK")
</pallas_src>

<mosaic_0001>
module attributes {stable_mosaic.version = 11 : i64} {
  func.func @ffnn_kernel(%arg0: i32, %arg1: memref<16x256xbf16, #tpu.memory_space<vmem>>, %arg2: memref<8x256xbf16, #tpu.memory_space<vmem>>, %arg3: memref<1xf32, #tpu.memory_space<smem>>, %arg4: memref<1x16xf32, #tpu.memory_space<vmem>>) attributes {dimension_semantics = [#tpu.dimension_semantics<parallel>], iteration_bounds = array<i64: 1>, scalar_prefetch = 0 : i64, scratch_operands = 0 : i64, tpu.core_type = #tpu.core_type<tc>, window_params = [{transform_indices = @transform_0, window_bounds = array<i64: 16, 256>}, {pipeline_mode = #tpu.pipeline_mode<synchronous>, transform_indices = @transform_1, window_bounds = array<i64: 8, 256>}, {transform_indices = @transform_2, window_bounds = array<i64: 1>}, {transform_indices = @transform_3, window_bounds = array<i64: 1, 16>}]} {
    %c0 = arith.constant 0 : index
    %c0_0 = arith.constant 0 : index
    %0 = vector.load %arg2[%c0, %c0_0] : memref<8x256xbf16, #tpu.memory_space<vmem>>, vector<8x256xbf16>
    %c0_1 = arith.constant 0 : index
    %c0_2 = arith.constant 0 : index
    %1 = vector.load %arg1[%c0_1, %c0_2] : memref<16x256xbf16, #tpu.memory_space<vmem>>, vector<16x256xbf16>
    %cst = arith.constant dense<0.000000e+00> : vector<8x16xf32>
    %2 = tpu.matmul %0, %1, %cst {dimension_numbers = #tpu.dot_dimension_numbers<[1], [1], [0], [0], [0, 0, 1, 0], [], []>} : vector<8x256xbf16>, vector<16x256xbf16>, vector<8x16xf32> -> vector<8x16xf32>
    %3 = vector.extract_strided_slice %2 {offsets = [0, 0], sizes = [1, 16], strides = [1, 1]} : vector<8x16xf32> to vector<1x16xf32>
    %c0_3 = arith.constant 0 : index
    %4 = memref.load %arg3[%c0_3] : memref<1xf32, #tpu.memory_space<smem>>
    %5 = vector.broadcast %4 : f32 to vector<1x16xf32>
    %6 = arith.addf %3, %5 : vector<1x16xf32>
    %7 = arith.negf %6 : vector<1x16xf32>
    %8 = math.exp %7 : vector<1x16xf32>
    %cst_4 = arith.constant 1.000000e+00 : f32
    %9 = vector.broadcast %cst_4 : f32 to vector<1x16xf32>
    %10 = arith.addf %9, %8 : vector<1x16xf32>
    %11 = arith.divf %9, %10 : vector<1x16xf32>
    %c0_5 = arith.constant 0 : index
    %c0_6 = arith.constant 0 : index
    %12 = vector.load %arg4[%c0_5, %c0_6] : memref<1x16xf32, #tpu.memory_space<vmem>>, vector<1x16xf32>
    tpu.vector_store %arg4[%c0_5, %c0_6], %11 {strides = array<i32>} : memref<1x16xf32, #tpu.memory_space<vmem>>, vector<1x16xf32>,
    return
  }
  func.func @transform_0(%arg0: i32) -> (i32, i32) {
    %c0_i32 = arith.constant 0 : i32
    %c0_i32_0 = arith.constant 0 : i32
    return %arg0, %c0_i32 : i32, i32
  }
  func.func @transform_1(%arg0: i32) -> (i32, i32) {
    %c0_i32 = arith.constant 0 : i32
    %c0_i32_0 = arith.constant 0 : i32
    %c0_i32_1 = arith.constant 0 : i32
    return %c0_i32, %c0_i32_0 : i32, i32
  }
  func.func @transform_2(%arg0: i32) -> i32 {
    %c0_i32 = arith.constant 0 : i32
    %c0_i32_0 = arith.constant 0 : i32
    return %c0_i32 : i32
  }
  func.func @transform_3(%arg0: i32) -> (i32, i32) {
    %c0_i32 = arith.constant 0 : i32
    %c0_i32_0 = arith.constant 0 : i32
    return %c0_i32, %arg0 : i32, i32
  }
}

</mosaic_0001>

<llo_original>
// kernel: tpu_custom_call.1
$region0: #{tpu_custom_call.1}
  #allocation0 [shape = 'u32[]', space=smem, size = 0x4, offset = 0x4, fixed_abs, tag = 'smem constant byte address 0x4 - core index']
  #allocation1 [shape = 'u32[72,128]{1,0:T(1,128)}', space=vmem, size = 0x9000, scoped, tag = 'internal scratch']
  #allocation2 [shape = 'f32[1]{0:T(128)S(6)}', space=smem, size = 0x200, scoped, tag = 'scoped memory for tpu_custom_call.1']
  %s0 = inlined_call_operand.hbm [shape: bf16[16,256], index: 0, kind: input, shape index: {}]
  %s1 = inlined_call_operand.hbm [shape: bf16[8,256], index: 1, kind: input, shape index: {}]
  %s2 = inlined_call_operand.<no memory space> [shape: f32[1], index: 2, kind: input, shape index: {}]
  %s3 = inlined_call_operand.hbm [shape: f32[1,16], index: 3, kind: output, shape index: {}]
  %s4 = sld [smem:[#allocation0]]
  $region30: #{tpu_custom_call.1} parent=0
    _
  %s6 = ssub.s32 1, %s4
  %s7 = scalar_select 0, %s6, %s4
  %8 = sst [smem:[#allocation2]] %s2
  $region1: #{tpu_custom_call.1} parent=0
    #allocation3 [shape = 'u8[8192]{0}', space=vmem, size = 0x2000, scoped, tag = 'input window, operand 0, single buffered']
    #allocation4 [shape = 's32[1]{0}', space=sflag, size = 0x4, scoped, tag = 'scoped memory for tpu_custom_call.1']
    #allocation5 [shape = 's32[1]{0}', space=sflag, size = 0x4, scoped, tag = 'scoped memory for tpu_custom_call.1']
    #allocation6 [shape = 'u8[4096]{0}', space=vmem, size = 0x1000, scoped, tag = 'input window, operand 1, single buffered']
    #allocation7 [shape = 's32[1]{0}', space=sflag, size = 0x4, scoped, tag = 'scoped memory for tpu_custom_call.1']
    #allocation8 [shape = 'u8[512]{0}', space=vmem, size = 0x400, scoped, tag = 'output window, operand 0, single buffered']
    %9 = vsyncpa [#allocation4], 0
    %10 = vsyncpa [#allocation7], 0
    %11 = vsyncpa [#allocation5], 0
    // Predicated region
    $region2: #{tpu_custom_call.1} parent=1 // pred_check
      _
    $region3: #{tpu_custom_call.1} parent=1 // pred_check_branch
      %13 = sbr.rel (0) target = $region5
    $region4: #{tpu_custom_call.1} parent=1 // pred_region
      %15 = vsyncadd [#allocation4], 0
      %s16 = sshll.u32 %s0, 4
      %s17 = int_to_ptr.hbm [resolvable:$true] %s16
      %s18 = sshll.u32 [#allocation3], 4
      %s19 = int_to_ptr.vmem [resolvable:$true] %s18
      %24 = dma.hbm_to_vmem [thread:$0]  %s17, 256, %s19, [#allocation4], 128, 128, 8
    $region5: #{tpu_custom_call.1} parent=1 // pred_fallthru
      _
    // Predicated region
    $region6: #{tpu_custom_call.1} parent=1 // pred_check
      _
    $region7: #{tpu_custom_call.1} parent=1 // pred_check_branch
      %26 = sbr.rel (0) target = $region9
    $region8: #{tpu_custom_call.1} parent=1 // pred_region
      %28 = vsyncadd [#allocation7], 0
      %s30 = sshll.u32 %s1, 4
      %s31 = int_to_ptr.hbm [resolvable:$true] %s30
      %s32 = sshll.u32 [#allocation6], 4
      %s33 = int_to_ptr.vmem [resolvable:$true] %s32
      %35 = dma.hbm_to_vmem [thread:$0]  %s31, 128, %s33, [#allocation7]
    $region9: #{tpu_custom_call.1} parent=1 // pred_fallthru
      _
    // Predicated region
    $region10: #{tpu_custom_call.1} parent=1 // pred_check
      _
    $region11: #{tpu_custom_call.1} parent=1 // pred_check_branch
      %37 = sbr.rel (0) target = $region13
    $region12: #{tpu_custom_call.1} parent=1 // pred_region
      _
    $region13: #{tpu_custom_call.1} parent=1 // pred_fallthru
      _
    // Predicated region
    $region14: #{tpu_custom_call.1} parent=1 // pred_check
      _
    $region15: #{tpu_custom_call.1} parent=1 // pred_check_branch
      %39 = sbr.rel (0) target = $region17
    $region16: #{tpu_custom_call.1} parent=1 // pred_region
      %41 = dma.done [#allocation4], 256
    $region17: #{tpu_custom_call.1} parent=1 // pred_fallthru
      _
    // Predicated region
    $region18: #{tpu_custom_call.1} parent=1 // pred_check
      _
    $region19: #{tpu_custom_call.1} parent=1 // pred_check_branch
      %43 = sbr.rel (0) target = $region21
    $region20: #{tpu_custom_call.1} parent=1 // pred_region
      %45 = dma.done [#allocation7], 128
    $region21: #{tpu_custom_call.1} parent=1 // pred_fallthru
      _
    %v47 = vld [vmem:[#allocation6] sm:$0xff]
    %v48 = vld [vmem:[#allocation3] sm:$0xff]
    %v49 = vld [vmem:[#allocation3 + $0x8] sm:$0xff]
    %v51 = vunpack.c.l.b16 %v47
    %v52 = vunpack.c.h.b16 %v47
    %v53 = vpack.c.b16 %v51, %v51
    %v54 = vpack.c.b16 %v52, %v52
    %v59 = vunpack.c.l.b16 %v48
    %v60 = vunpack.c.h.b16 %v48
    %v61 = vunpack.c.l.b16 %v49
    %v62 = vunpack.c.h.b16 %v49
    %v63 = vpack.c.b16 %v61, %v59
    %v64 = vpack.c.b16 %v62, %v60
    %67 = vmatpush.bf16.xpose.msra.mxu0 0
    %68 = vmatpush.bf16.xpose.msra.mxu0 0
    %69 = vmatpush.bf16.xpose.msra.mxu0 0
    %70 = vmatpush.bf16.xpose.msra.mxu0 0
    %71 = vmatpush.bf16.xpose.msra.mxu0 0
    %72 = vmatpush.bf16.xpose.msra.mxu0 0
    %73 = vmatpush.bf16.xpose.msra.mxu0 0
    %74 = vmatpush.bf16.xpose.msra.mxu0 %v63
    %75 = vmatmul.bf16.gmra.mxu0 %v53
    %v76 = vpop.f32.mrf.mxu0
    %v77 = vadd.f32 0.0, %v76
    %v78 = vpop.f32.mrf.mxu0
    %79 = vdwg.mxu0
    %80 = vmatpush.bf16.xpose.msra.mxu0 0
    %81 = vmatpush.bf16.xpose.msra.mxu0 0
    %82 = vmatpush.bf16.xpose.msra.mxu0 0
    %83 = vmatpush.bf16.xpose.msra.mxu0 0
    %84 = vmatpush.bf16.xpose.msra.mxu0 0
    %85 = vmatpush.bf16.xpose.msra.mxu0 0
    %86 = vmatpush.bf16.xpose.msra.mxu0 0
    %87 = vmatpush.bf16.xpose.msra.mxu0 %v64
    %88 = vmatmul.bf16.gmra.mxu0 %v54
    %v89 = vpop.f32.mrf.mxu0
    %v90 = vadd.f32 %v77, %v89
    %v91 = vpop.f32.mrf.mxu0
    %92 = vdwg.mxu0
    %s93 = sld [smem:[#allocation2]]
    %v94 = vstv %s93
    %v95 = vadd.f32 %v90, %v94
    %v96 = vxor.u32 %v95, 2147483648
    %v97 = vmul.f32 %v96, 1.442695
    %v98 = vpow.pop %v97
    %v99 = vadd.f32 %v98, 1.0
    %v100 = vrcp.pop %v99
    %v101 = vmul.f32 %v99, %v100
    %v102 = vsub.f32 1.0, %v101
    %v103 = vmul.f32 %v100, %v102
    %v104 = vadd.f32 %v100, %v103
    %vm105 = vweird.f32 %v99
    %vm106 = vweird.f32 %v100
    %vm107 = vmor %vm105, %vm106
    %v108 = vsel %vm107, %v100, %v104
    %v109 = vand.u32 2147483647, %v99
    %vm110 = vcmp.eq.f32.partialorder %v109, 8.507059e+37
    %v111 = vand.u32 %v99, 2147483648
    %v112 = vor.u32 1.1754944e-38, %v111
    %v113 = vsel %vm110, %v112, %v108
    %v114 = vmul.f32 1.0, %v113
    %vm115 = vcmask 122880
    %116 = vst.msk [vmem:[#allocation8] sm:$0x1] %vm115, %v114
    // Predicated region
    $region22: #{tpu_custom_call.1} parent=1 // pred_check
      _
    $region23: #{tpu_custom_call.1} parent=1 // pred_check_branch
      %118 = sbr.rel (0) target = $region25
    $region24: #{tpu_custom_call.1} parent=1 // pred_region
      %120 = vsyncadd [#allocation5], 0
      %s122 = sshll.u32 [#allocation8], 4
      %s123 = int_to_ptr.vmem [resolvable:$true] %s122
      %s124 = sshll.u32 %s3, 4
      %s125 = int_to_ptr.hbm [resolvable:$true] %s124
      %127 = dma.vmem_to_hbm [thread:$0]  %s123, 16, %s125, [#allocation5]
    $region25: #{tpu_custom_call.1} parent=1 // pred_fallthru
      _
    // Predicated region
    $region26: #{tpu_custom_call.1} parent=1 // pred_check
      _
    $region27: #{tpu_custom_call.1} parent=1 // pred_check_branch
      %129 = sbr.rel (0) target = $region29
    $region28: #{tpu_custom_call.1} parent=1 // pred_region
      %131 = dma.done [#allocation5], 16
    $region29: #{tpu_custom_call.1} parent=1 // pred_fallthru
      _
    %132 = vsyncpa [#allocation4], 1
    %133 = vsyncpa [#allocation7], 1
    %134 = vsyncpa [#allocation5], 1

</llo_original>
